<compile_context>
chip_gen: v6e
topology: v6e:2x2x1
jax: 0.10.0
libtpu: 0.0.40
codegen_flags: <defaults>
</compile_context>

<pallas_src>
import jax
import jax.numpy as jnp
from jax.experimental import pallas as pl
from jax.experimental.pallas import tpu as pltpu


def _round_up(x, m):
    return (x + m - 1) // m * m


def _make_kernel(*, scale, n_valid, c_valid, n_pad, c_pad, mxu_dtype):
    scale = float(scale)

    def kernel(x_ref, p_ref, t_ref, out_ref, pn_ref, acc_ref):
        i = pl.program_id(0)
        tn = x_ref.shape[0]

        # ---- one-time work on the first grid step -----------------------
        @pl.when(i == 0)
        def _init():
            p = p_ref[...].astype(jnp.float32)
            # scale * F.normalize(p): 1/max(||p||,1e-12) == rsqrt(max(||p||^2,1e-24))
            inv_p = jax.lax.rsqrt(
                jnp.maximum(jnp.sum(p * p, axis=-1, keepdims=True), 1e-24))
            pn_ref[...] = (p * (inv_p * scale)).astype(mxu_dtype)
            acc_ref[...] = jnp.zeros_like(acc_ref)

        # ---- per-tile: normalize the X rows ------------------------------
        x = x_ref[...].astype(jnp.float32)
        inv_x = jax.lax.rsqrt(
            jnp.maximum(jnp.sum(x * x, axis=-1, keepdims=True), 1e-24))
        # Fold the "2" of the squared-distance cross term into xn's scale.
        xn = (x * (inv_x * (2.0 * scale))).astype(mxu_dtype)

        # D[i,j] = |x_i|^2 + |p_j|^2 - 2 x_i.p_j, with |x_i|^2 = |p_j|^2 = scale^2
        # constant => log_softmax(-D, -1) == log_softmax(2 * xn.pn, -1).
        # Contract both last (lane) dims directly; f32 accumulation on the MXU.
        logits = jax.lax.dot_general(
            xn, pn_ref[...], (((1,), (1,)), ((), ())),
            preferred_element_type=jnp.float32)                 # (tn, c_pad)

        col = jax.lax.broadcasted_iota(jnp.int32, logits.shape, 1)
        if c_pad != c_valid:  # mask padded (zero) proxy columns out of the softmax
            logits = jnp.where(col < c_valid, logits, -1e30)

        m = jnp.max(logits, axis=-1, keepdims=True)
        lse = m + jnp.log(jnp.sum(jnp.exp(logits - m), axis=-1, keepdims=True))

        # per-sample loss = -log_softmax[row, label] = lse - logits[row, label]
        labels = t_ref[...]                                     # (tn, 1) int32
        label_logit = jnp.sum(
            jnp.where(col == labels, logits, 0.0), axis=-1, keepdims=True)
        per_row = lse - label_logit                             # (tn, 1)

        if n_pad != n_valid:  # mask padded batch rows
            row = jax.lax.broadcasted_iota(jnp.int32, per_row.shape, 0) + i * tn
            per_row = jnp.where(row < n_valid, per_row, 0.0)

        acc_ref[...] += jnp.sum(per_row).reshape(1, 1)

        # Write the (1,1) output only on the final grid step.
        @pl.when(i == pl.num_programs(0) - 1)
        def _finalize():
            out_ref[...] = acc_ref[...] * (1.0 / n_valid)

    return kernel


def proxynca_prob_loss(X, proxies, T, scale, *, block_n=128,
                       mxu_dtype=jnp.bfloat16):
    """JAX/Pallas equivalent of ProxyNCA_prob.forward(X, T)."""
    N, E = X.shape
    C, E2 = proxies.shape
    assert E == E2

    # Glue: binarize_and_smooth_labels with smooth_const=0 == hard one-hot,
    # which we represent as integer labels (no dense (N,C) matrix).
    if T.ndim == 2:
        # TODO(synk): soft / smoothed 2-D targets would need the dense-T path.
        T = jnp.argmax(T, axis=-1)
    labels = T.astype(jnp.int32)

    # Lane-dense padding: E, C -> multiples of 128; N -> multiple of the tile.
    e_pad = _round_up(E, 128)
    c_pad = _round_up(C, 128)
    tn = min(block_n, _round_up(N, 8))
    n_pad = _round_up(N, tn)

    Xp = jnp.pad(X, ((0, n_pad - N), (0, e_pad - E)))
    Pp = jnp.pad(proxies, ((0, c_pad - C), (0, e_pad - E)))
    Lp = jnp.pad(labels, (0, n_pad - N)).reshape(n_pad, 1)

    kernel = _make_kernel(scale=float(scale), n_valid=N, c_valid=C,
                          n_pad=n_pad, c_pad=c_pad, mxu_dtype=mxu_dtype)

    loss = pl.pallas_call(
        kernel,
        out_shape=jax.ShapeDtypeStruct((1, 1), jnp.float32),
        grid_spec=pltpu.PrefetchScalarGridSpec(
            num_scalar_prefetch=0,
            grid=(n_pad // tn,),
            in_specs=[
                pl.BlockSpec((tn, e_pad), lambda i: (i, 0)),      # X tiles
                pl.BlockSpec((c_pad, e_pad), lambda i: (0, 0)),   # resident proxies
                pl.BlockSpec((tn, 1), lambda i: (i, 0)),          # int labels
            ],
            out_specs=pl.BlockSpec((1, 1), lambda i: (0, 0)),
            scratch_shapes=[
                pltpu.VMEM((c_pad, e_pad), mxu_dtype),            # normalized proxies
                pltpu.VMEM((1, 1), jnp.float32),                  # loss accumulator
            ],
        ),
        # Sequential over N: single shared accumulator + one-shot proxy
        # normalization require "arbitrary" (not megacore-parallel).
        compiler_params=pltpu.CompilerParams(
            dimension_semantics=("arbitrary",)),
    )(Xp, Pp, Lp)
    return loss[0, 0]


def _ref_loss(X, P, T, scale):
    """Pure-JAX reference mirroring the PyTorch module (smooth_const=0)."""
    Xn = scale * X / jnp.maximum(
        jnp.linalg.norm(X, axis=-1, keepdims=True), 1e-12)
    Pn = scale * P / jnp.maximum(
        jnp.linalg.norm(P, axis=-1, keepdims=True), 1e-12)
    D = (jnp.sum(Xn * Xn, axis=-1, keepdims=True)
         + jnp.sum(Pn * Pn, axis=-1)[None, :]
         - 2.0 * (Xn @ Pn.T))
    D = jnp.maximum(D, 0.0)
    T1 = jax.nn.one_hot(T, P.shape[0], dtype=jnp.float32)
    return jnp.mean(jnp.sum(-T1 * jax.nn.log_softmax(-D, axis=-1), axis=-1))


if __name__ == "__main__":
    # Small, module-consistent shapes: batch N=16, embedding E=32, classes C=16.
    num_classes = 16
    embedding_size = 32
    batch = 16
    scale = 3.0

    key = jax.random.PRNGKey(0)
    k_p, k_x, k_t = jax.random.split(key, 3)

    proxies = jax.random.normal(k_p, (num_classes, embedding_size),
                                dtype=jnp.float32) / 8.0
    X = jax.random.normal(k_x, (batch, embedding_size), dtype=jnp.float32)
    T = jax.random.randint(k_t, (batch,), 0, num_classes, dtype=jnp.int32)

    # block_n=8 so the 16-row toy batch exercises a 2-step grid / accumulator.
    loss = proxynca_prob_loss(X, proxies, T, scale, block_n=8)
    jax.block_until_ready(loss)

    # Tolerance check vs. the pure-JAX f32 reference (bf16 MXU operands).
    ref = _ref_loss(X, proxies, T, scale)
    err = abs(float(loss) - float(ref))
    assert err <= 5e-2 * max(1.0, abs(float(ref))), (float(loss), float(ref))

    print("KERNEL_OK")
</pallas_src>

<mosaic_0001>
module attributes {stable_mosaic.version = 11 : i64} {
  func.func @kernel(%arg0: i32, %arg1: memref<8x128xf32, #tpu.memory_space<vmem>>, %arg2: memref<128x128xf32, #tpu.memory_space<vmem>>, %arg3: memref<8x1xi32, #tpu.memory_space<vmem>>, %arg4: memref<1x1xf32, #tpu.memory_space<vmem>>, %arg5: memref<128x128xbf16, #tpu.memory_space<vmem>>, %arg6: memref<1x1xf32, #tpu.memory_space<vmem>>) attributes {dimension_semantics = [#tpu.dimension_semantics<arbitrary>], iteration_bounds = array<i64: 2>, scalar_prefetch = 0 : i64, scratch_operands = 2 : i64, tpu.core_type = #tpu.core_type<tc>, window_params = [{transform_indices = @transform_0, window_bounds = array<i64: 8, 128>}, {pipeline_mode = #tpu.pipeline_mode<synchronous>, transform_indices = @transform_1, window_bounds = array<i64: 128, 128>}, {transform_indices = @transform_2, window_bounds = array<i64: 8, 1>}, {pipeline_mode = #tpu.pipeline_mode<synchronous>, transform_indices = @transform_3, window_bounds = array<i64: 1, 1>}]} {
    %c0_i32 = arith.constant 0 : i32
    %0 = arith.cmpi eq, %arg0, %c0_i32 : i32
    %1 = arith.extui %0 : i1 to i32
    %c0_i32_0 = arith.constant 0 : i32
    %2 = arith.cmpi ne, %1, %c0_i32_0 : i32
    scf.if %2 {
      %c0_20 = arith.constant 0 : index
      %c0_21 = arith.constant 0 : index
      %50 = vector.load %arg2[%c0_20, %c0_21] : memref<128x128xf32, #tpu.memory_space<vmem>>, vector<128x128xf32>
      %51 = arith.mulf %50, %50 : vector<128x128xf32>
      %cst_22 = arith.constant dense<0.000000e+00> : vector<128xf32>
      %52 = vector.multi_reduction <add>, %51, %cst_22 [1] : vector<128x128xf32> to vector<128xf32>
      %53 = vector.shape_cast %52 : vector<128xf32> to vector<128x1xf32>
      %cst_23 = arith.constant 1.000000e-24 : f32
      %54 = vector.broadcast %cst_23 : f32 to vector<128x1xf32>
      %55 = arith.maximumf %53, %54 : vector<128x1xf32>
      %56 = math.rsqrt %55 : vector<128x1xf32>
      %cst_24 = arith.constant 3.000000e+00 : f32
      %57 = vector.broadcast %cst_24 : f32 to vector<128x1xf32>
      %58 = arith.mulf %56, %57 : vector<128x1xf32>
      %59 = vector.broadcast %58 : vector<128x1xf32> to vector<128x128xf32>
      %60 = arith.mulf %50, %59 : vector<128x128xf32>
      %61 = arith.truncf %60 : vector<128x128xf32> to vector<128x128xbf16>
      %c0_25 = arith.constant 0 : index
      %c0_26 = arith.constant 0 : index
      %62 = vector.load %arg5[%c0_25, %c0_26] : memref<128x128xbf16, #tpu.memory_space<vmem>>, vector<128x128xbf16>
      tpu.vector_store %arg5[%c0_25, %c0_26], %61 {strides = array<i32>} : memref<128x128xbf16, #tpu.memory_space<vmem>>, vector<128x128xbf16>,
      %cst_27 = arith.constant 0.000000e+00 : f32
      %63 = vector.broadcast %cst_27 : f32 to vector<1x1xf32>
      %c0_28 = arith.constant 0 : index
      %c0_29 = arith.constant 0 : index
      %64 = vector.load %arg6[%c0_28, %c0_29] : memref<1x1xf32, #tpu.memory_space<vmem>>, vector<1x1xf32>
      tpu.vector_store %arg6[%c0_28, %c0_29], %63 {strides = array<i32>} : memref<1x1xf32, #tpu.memory_space<vmem>>, vector<1x1xf32>,
    } else {
    }
    %c0 = arith.constant 0 : index
    %c0_1 = arith.constant 0 : index
    %3 = vector.load %arg1[%c0, %c0_1] : memref<8x128xf32, #tpu.memory_space<vmem>>, vector<8x128xf32>
    %4 = arith.mulf %3, %3 : vector<8x128xf32>
    %cst = arith.constant dense<0.000000e+00> : vector<8xf32>
    %5 = vector.multi_reduction <add>, %4, %cst [1] : vector<8x128xf32> to vector<8xf32>
    %6 = vector.shape_cast %5 : vector<8xf32> to vector<8x1xf32>
    %cst_2 = arith.constant 1.000000e-24 : f32
    %7 = vector.broadcast %cst_2 : f32 to vector<8x1xf32>
    %8 = arith.maximumf %6, %7 : vector<8x1xf32>
    %9 = math.rsqrt %8 : vector<8x1xf32>
    %cst_3 = arith.constant 6.000000e+00 : f32
    %10 = vector.broadcast %cst_3 : f32 to vector<8x1xf32>
    %11 = arith.mulf %9, %10 : vector<8x1xf32>
    %12 = vector.broadcast %11 : vector<8x1xf32> to vector<8x128xf32>
    %13 = arith.mulf %3, %12 : vector<8x128xf32>
    %14 = arith.truncf %13 : vector<8x128xf32> to vector<8x128xbf16>
    %c0_4 = arith.constant 0 : index
    %c0_5 = arith.constant 0 : index
    %15 = vector.load %arg5[%c0_4, %c0_5] : memref<128x128xbf16, #tpu.memory_space<vmem>>, vector<128x128xbf16>
    %cst_6 = arith.constant dense<0.000000e+00> : vector<8x128xf32>
    %16 = tpu.matmul %14, %15, %cst_6 {dimension_numbers = #tpu.dot_dimension_numbers<[1], [1], [0], [0], [0, 0, 1, 0], [], []>} : vector<8x128xbf16>, vector<128x128xbf16>, vector<8x128xf32> -> vector<8x128xf32>
    %17 = tpu.iota {dimensions = array<i32: 1>} : vector<8x128xi32>
    %c16_i32 = arith.constant 16 : i32
    %18 = vector.broadcast %c16_i32 : i32 to vector<8x128xi32>
    %19 = arith.cmpi slt, %17, %18 : vector<8x128xi32>
    %cst_7 = arith.constant -1.000000e+30 : f32
    %20 = vector.broadcast %cst_7 : f32 to vector<8x128xf32>
    %21 = arith.select %19, %16, %20 : vector<8x128xi1>, vector<8x128xf32>
    %cst_8 = arith.constant dense<0xFF800000> : vector<8xf32>
    %22 = vector.multi_reduction <maximumf>, %21, %cst_8 [1] : vector<8x128xf32> to vector<8xf32>
    %23 = vector.shape_cast %22 : vector<8xf32> to vector<8x1xf32>
    %24 = vector.broadcast %23 : vector<8x1xf32> to vector<8x128xf32>
    %25 = arith.subf %21, %24 : vector<8x128xf32>
    %26 = math.exp %25 : vector<8x128xf32>
    %cst_9 = arith.constant dense<0.000000e+00> : vector<8xf32>
    %27 = vector.multi_reduction <add>, %26, %cst_9 [1] : vector<8x128xf32> to vector<8xf32>
    %28 = vector.shape_cast %27 : vector<8xf32> to vector<8x1xf32>
    %29 = math.log %28 : vector<8x1xf32>
    %30 = arith.addf %23, %29 : vector<8x1xf32>
    %c0_10 = arith.constant 0 : index
    %c0_11 = arith.constant 0 : index
    %31 = vector.load %arg3[%c0_10, %c0_11] : memref<8x1xi32, #tpu.memory_space<vmem>>, vector<8x1xi32>
    %32 = vector.broadcast %31 : vector<8x1xi32> to vector<8x128xi32>
    %33 = arith.cmpi eq, %17, %32 : vector<8x128xi32>
    %cst_12 = arith.constant 0.000000e+00 : f32
    %34 = vector.broadcast %cst_12 : f32 to vector<8x128xf32>
    %35 = arith.select %33, %21, %34 : vector<8x128xi1>, vector<8x128xf32>
    %cst_13 = arith.constant dense<0.000000e+00> : vector<8xf32>
    %36 = vector.multi_reduction <add>, %35, %cst_13 [1] : vector<8x128xf32> to vector<8xf32>
    %37 = vector.shape_cast %36 : vector<8xf32> to vector<8x1xf32>
    %38 = arith.subf %30, %37 : vector<8x1xf32>
    %c0_14 = arith.constant 0 : index
    %c0_15 = arith.constant 0 : index
    %39 = vector.load %arg6[%c0_14, %c0_15] : memref<1x1xf32, #tpu.memory_space<vmem>>, vector<1x1xf32>
    %40 = vector.shape_cast %38 : vector<8x1xf32> to vector<1x8x1xf32>
    %cst_16 = arith.constant dense<0.000000e+00> : vector<1xf32>
    %41 = vector.multi_reduction <add>, %40, %cst_16 [1, 2] : vector<1x8x1xf32> to vector<1xf32>
    %42 = vector.shape_cast %41 : vector<1xf32> to vector<1x1x1xf32>
    %43 = vector.extract %42[0, 0, 0] : f32 from vector<1x1x1xf32>
    %44 = vector.broadcast %43 : f32 to vector<1x1xf32>
    %45 = arith.addf %39, %44 : vector<1x1xf32>
    %c0_17 = arith.constant 0 : index
    %c0_18 = arith.constant 0 : index
    %46 = vector.load %arg6[%c0_17, %c0_18] : memref<1x1xf32, #tpu.memory_space<vmem>>, vector<1x1xf32>
    tpu.vector_store %arg6[%c0_17, %c0_18], %45 {strides = array<i32>} : memref<1x1xf32, #tpu.memory_space<vmem>>, vector<1x1xf32>,
    %c1_i32 = arith.constant 1 : i32
    %47 = arith.cmpi eq, %arg0, %c1_i32 : i32
    %48 = arith.extui %47 : i1 to i32
    %c0_i32_19 = arith.constant 0 : i32
    %49 = arith.cmpi ne, %48, %c0_i32_19 : i32
    scf.if %49 {
      %c0_20 = arith.constant 0 : index
      %c0_21 = arith.constant 0 : index
      %50 = vector.load %arg6[%c0_20, %c0_21] : memref<1x1xf32, #tpu.memory_space<vmem>>, vector<1x1xf32>
      %cst_22 = arith.constant 6.250000e-02 : f32
      %51 = vector.broadcast %cst_22 : f32 to vector<1x1xf32>
      %52 = arith.mulf %50, %51 : vector<1x1xf32>
      %c0_23 = arith.constant 0 : index
      %c0_24 = arith.constant 0 : index
      %53 = vector.load %arg4[%c0_23, %c0_24] : memref<1x1xf32, #tpu.memory_space<vmem>>, vector<1x1xf32>
      tpu.vector_store %arg4[%c0_23, %c0_24], %52 {strides = array<i32>} : memref<1x1xf32, #tpu.memory_space<vmem>>, vector<1x1xf32>,
    } else {
    }
    return
  }
  func.func @transform_0(%arg0: i32) -> (i32, i32) {
    %c0_i32 = arith.constant 0 : i32
    %c0_i32_0 = arith.constant 0 : i32
    return %arg0, %c0_i32 : i32, i32
  }
  func.func @transform_1(%arg0: i32) -> (i32, i32) {
    %c0_i32 = arith.constant 0 : i32
    %c0_i32_0 = arith.constant 0 : i32
    %c0_i32_1 = arith.constant 0 : i32
    return %c0_i32, %c0_i32_0 : i32, i32
  }
  func.func @transform_2(%arg0: i32) -> (i32, i32) {
    %c0_i32 = arith.constant 0 : i32
    %c0_i32_0 = arith.constant 0 : i32
    return %arg0, %c0_i32 : i32, i32
  }
  func.func @transform_3(%arg0: i32) -> (i32, i32) {
    %c0_i32 = arith.constant 0 : i32
    %c0_i32_0 = arith.constant 0 : i32
    %c0_i32_1 = arith.constant 0 : i32
    return %c0_i32, %c0_i32_0 : i32, i32
  }
}

</mosaic_0001>

<llo_original>
// kernel: tpu_custom_call.1
$region0: #{tpu_custom_call.1}
  #allocation0 [shape = 'u32[]', space=smem, size = 0x4, offset = 0x4, fixed_abs, tag = 'smem constant byte address 0x4 - core index']
  #allocation1 [shape = 'u32[144,128]{1,0:T(1,128)}', space=vmem, size = 0x12000, scoped, tag = 'internal scratch']
  #allocation2 [shape = 'bf16[128,128]{1,0:T(8,128)(2,1)}', space=vmem, size = 0x8000, scoped, tag = 'scratch operand']
  #allocation3 [shape = 'f32[1,1]{1,0:T(1,128)}', space=vmem, size = 0x200, scoped, tag = 'scratch operand']
  %s0 = inlined_call_operand.vmem [shape: f32[16,128], index: 0, kind: input, shape index: {}]
  %s1 = inlined_call_operand.hbm [shape: f32[128,128], index: 1, kind: input, shape index: {}]
  %s2 = inlined_call_operand.vmem [shape: s32[16,1], index: 2, kind: input, shape index: {}]
  %s3 = inlined_call_operand.hbm [shape: f32[1,1], index: 3, kind: output, shape index: {}]
  %s4 = sld [smem:[#allocation0]]
  $region57: #{tpu_custom_call.1} parent=0
    _
  %s6 = ssub.s32 1, %s4
  %s7 = scalar_select 0, %s6, %s4
  $region1: #{tpu_custom_call.1} parent=0
    #allocation4 [shape = 'u8[65536]{0}', space=vmem, size = 0x10000, scoped, tag = 'input window, operand 1, single buffered']
    #allocation5 [shape = 's32[2]{0}', space=sflag, size = 0x8, scoped, tag = 'scoped memory for tpu_custom_call.1']
    #allocation6 [shape = 's32[2]{0}', space=sflag, size = 0x8, scoped, tag = 'scoped memory for tpu_custom_call.1']
    #allocation7 [shape = 'u8[512]{0}', space=vmem, size = 0x400, scoped, tag = 'output window, operand 0, single buffered']
    %8 = vsyncpa [#allocation5], 0
    %9 = vsyncpa [#allocation6], 0
    loop: start=0, step=1, limit=4
    $region2: #{tpu_custom_call.1} parent=1 // loop_pre_header
      _
    $region3: #{tpu_custom_call.1} parent=1 // loop_header
      %s11 = sphi 0, %s15
      %p12 = scmp.ge.s32.totalorder %s11, 4
      %s21 = sphi 0, %s23
      %s24 = sphi 0, %s21
      %s25 = sphi 0, %s24
      %s41 = sphi 0, %s25
      %s45 = sphi 0, %s45
      %s47 = sphi 0, %s45
      %s48 = sphi 0, %s47
      %s62 = sphi 0, %s48
      %s68 = sphi 0, %s70
      %s71 = sphi 0, %s68
      %s72 = sphi 0, %s71
      %s88 = sphi 0, %s72
      %s92 = sphi 0, %s92
      %s94 = sphi 0, %s92
      %s95 = sphi 0, %s94
      %s109 = sphi 0, %s95
    $region4: #{tpu_custom_call.1} parent=1 // loop_header_branch
      %14 = sbr.rel (%p12) target = $region8
    $region5: #{tpu_custom_call.1} parent=1 // loop_body
      %s16 = ssub.s32 %s11, 1
      %s17 = ssub.s32 %s11, 2
      %s18 = sadd.s32 %s11, 1
      %s19 = ssub.s32 %s11, %s18
      %p20 = scmp.eq.s32.totalorder %s19, 0
      %s22 = sadd.s32 %s21, 1
      %s23 = scalar_select %p20, %s21, %s22
      %p26 = pneg %p20
      %p27 = scmp.eq.s32.totalorder %s11, 1
      %p28 = por %p26, %p27
      %p29 = scmp.ne.s32.totalorder %s21, %s24
      %p30 = scmp.eq.s32.totalorder %s11, 0
      %p31 = por %p29, %p30
      %p32 = scmp.ne.s32.totalorder %s21, %s24
      %p33 = scmp.eq.s32.totalorder %s16, 1
      %p34 = por %p32, %p33
      %p35 = scmp.ne.s32.totalorder %s24, %s25
      %p36 = scmp.eq.s32.totalorder %s16, 0
      %p37 = por %p35, %p36
      %p38 = scmp.ne.s32.totalorder %s24, %s25
      %p39 = scmp.eq.s32.totalorder %s17, 1
      %p40 = por %p38, %p39
      %p42 = scmp.ne.s32.totalorder %s25, %s41
      %p43 = scmp.eq.s32.totalorder %s17, 0
      %p44 = por %p42, %p43
      %s46 = sadd.s32 %s45, 1
      %p49 = scmp.eq.s32.totalorder %s11, 1
      %p50 = scmp.ne.s32.totalorder %s45, %s47
      %p51 = scmp.eq.s32.totalorder %s11, 0
      %p52 = por %p50, %p51
      %p53 = scmp.ne.s32.totalorder %s45, %s47
      %p54 = scmp.eq.s32.totalorder %s16, 1
      %p55 = por %p53, %p54
      %p56 = scmp.ne.s32.totalorder %s47, %s48
      %p57 = scmp.eq.s32.totalorder %s16, 0
      %p58 = por %p56, %p57
      %p59 = scmp.ne.s32.totalorder %s47, %s48
      %p60 = scmp.eq.s32.totalorder %s17, 1
      %p61 = por %p59, %p60
      %p63 = scmp.ne.s32.totalorder %s48, %s62
      %p64 = scmp.eq.s32.totalorder %s17, 0
      %p65 = por %p63, %p64
      %s66 = ssub.s32 %s11, %s18
      %p67 = scmp.eq.s32.totalorder %s66, 0
      %s69 = sadd.s32 %s68, 1
      %s70 = scalar_select %p67, %s68, %s69
      %p73 = pneg %p67
      %p74 = scmp.eq.s32.totalorder %s11, 1
      %p75 = por %p73, %p74
      %p76 = scmp.ne.s32.totalorder %s68, %s71
      %p77 = scmp.eq.s32.totalorder %s11, 0
      %p78 = por %p76, %p77
      %p79 = scmp.ne.s32.totalorder %s68, %s71
      %p80 = scmp.eq.s32.totalorder %s16, 1
      %p81 = por %p79, %p80
      %p82 = scmp.ne.s32.totalorder %s71, %s72
      %p83 = scmp.eq.s32.totalorder %s16, 0
      %p84 = por %p82, %p83
      %p85 = scmp.ne.s32.totalorder %s71, %s72
      %p86 = scmp.eq.s32.totalorder %s17, 1
      %p87 = por %p85, %p86
      %p89 = scmp.ne.s32.totalorder %s72, %s88
      %p90 = scmp.eq.s32.totalorder %s17, 0
      %p91 = por %p89, %p90
      %s93 = sadd.s32 %s92, 1
      %p96 = scmp.eq.s32.totalorder %s11, 1
      %p97 = scmp.ne.s32.totalorder %s92, %s94
      %p98 = scmp.eq.s32.totalorder %s11, 0
      %p99 = por %p97, %p98
      %p100 = scmp.ne.s32.totalorder %s92, %s94
      %p101 = scmp.eq.s32.totalorder %s16, 1
      %p102 = por %p100, %p101
      %p103 = scmp.ne.s32.totalorder %s94, %s95
      %p104 = scmp.eq.s32.totalorder %s16, 0
      %p105 = por %p103, %p104
      %p106 = scmp.ne.s32.totalorder %s94, %s95
      %p107 = scmp.eq.s32.totalorder %s17, 1
      %p108 = por %p106, %p107
      %p110 = scmp.ne.s32.totalorder %s95, %s109
      %p111 = scmp.eq.s32.totalorder %s17, 0
      %p112 = por %p110, %p111
      %p113 = scmp.le.s32.totalorder 1, %s11
      %p114 = scmp.lt.s32.totalorder %s11, 3
      %p115 = pnand %p113, %p114
      %p116 = pneg %p115
      // Predicated region
      $region9: #{tpu_custom_call.1} parent=5 // pred_check
        _
      $region10: #{tpu_custom_call.1} parent=5 // pred_check_branch
        %118 = sbr.rel (%p115) target = $region12
      $region11: #{tpu_custom_call.1} parent=5 // pred_region
        %s119 = ssub.s32 %s11, 1
        // Predicated region
        $region13: #{tpu_custom_call.1} parent=11 // pred_check
          %p120 = pneg %p58
        $region14: #{tpu_custom_call.1} parent=11 // pred_check_branch
          %122 = sbr.rel (%p120) target = $region16
        $region15: #{tpu_custom_call.1} parent=11 // pred_region
          %s124 = ssub.s32 2048, 2048
          %125 = vsyncadd [#allocation5], %s124
          %s126 = sshll.u32 [#allocation4], 4
          %s127 = int_to_ptr.vmem [resolvable:$true] %s126
          %132 = dma.hbm_to_vmem [thread:$0]  %s1, 2048, %s127, [#allocation5], 128, 128, 8
        $region16: #{tpu_custom_call.1} parent=11 // pred_fallthru
          _
      $region12: #{tpu_custom_call.1} parent=5 // pred_fallthru
        _
      %p133 = scmp.lt.s32.totalorder %s11, 2
      // Predicated region
      $region17: #{tpu_custom_call.1} parent=5 // pred_check
        %p134 = pneg %p133
      $region18: #{tpu_custom_call.1} parent=5 // pred_check_branch
        %136 = sbr.rel (%p134) target = $region20
      $region19: #{tpu_custom_call.1} parent=5 // pred_region
        // Predicated region
        $region21: #{tpu_custom_call.1} parent=19 // pred_check
          %p137 = pneg %p31
        $region22: #{tpu_custom_call.1} parent=19 // pred_check_branch
          %139 = sbr.rel (%p137) target = $region24
        $region23: #{tpu_custom_call.1} parent=19 // pred_region
          %p140 = scmp.lt.s32.totalorder %s11, 1
          %s141 = scalar_select %p140, %s11, 1
          %s142 = smul.addr %s141, 8
          %s143 = scalar_lea.vmem %s0, %s142
        $region24: #{tpu_custom_call.1} parent=19 // pred_fallthru
          _
        // Predicated region
        $region25: #{tpu_custom_call.1} parent=19 // pred_check
          %p144 = pneg %p78
        $region26: #{tpu_custom_call.1} parent=19 // pred_check_branch
          %146 = sbr.rel (%p144) target = $region28
        $region27: #{tpu_custom_call.1} parent=19 // pred_region
          %p147 = scmp.lt.s32.totalorder %s11, 1
          %s148 = scalar_select %p147, %s11, 1
          %s149 = smul.addr %s148, 8
          %s150 = scalar_lea.vmem %s2, %s149
        $region28: #{tpu_custom_call.1} parent=19 // pred_fallthru
          _
      $region20: #{tpu_custom_call.1} parent=5 // pred_fallthru
        _
      %p151 = scmp.le.s32.totalorder 1, %s11
      %p152 = scmp.lt.s32.totalorder %s11, 3
      %p153 = pnand %p151, %p152
      %p154 = pneg %p153
      // Predicated region
      $region29: #{tpu_custom_call.1} parent=5 // pred_check
        _
      $region30: #{tpu_custom_call.1} parent=5 // pred_check_branch
        %156 = sbr.rel (%p153) target = $region32
      $region31: #{tpu_custom_call.1} parent=5 // pred_region
        %s157 = ssub.s32 %s11, 1
        // Predicated region
        $region33: #{tpu_custom_call.1} parent=31 // pred_check
          %p158 = pneg %p58
        $region34: #{tpu_custom_call.1} parent=31 // pred_check_branch
          %160 = sbr.rel (%p158) target = $region36
        $region35: #{tpu_custom_call.1} parent=31 // pred_region
          %161 = dma.done [#allocation5], 2048
        $region36: #{tpu_custom_call.1} parent=31 // pred_fallthru
          _
        %p162 = scmp.lt.s32.totalorder %s16, 1
        %s163 = scalar_select %p162, %s16, 1
        %s164 = smul.addr %s163, 8
        %s165 = scalar_lea.vmem %s0, %s164
        %p166 = pneg %p37
        %p167 = pneg %p34
        %p168 = pneg %p58
        %p169 = pneg %p55
        %p170 = scmp.lt.s32.totalorder %s16, 1
        %s171 = scalar_select %p170, %s16, 1
        %s172 = smul.addr %s171, 8
        %s173 = scalar_lea.vmem %s2, %s172
        %p174 = pneg %p84
        %p175 = pneg %p81
        %p176 = pneg %p105
        %p177 = pneg %p102
        %p178 = scmp.lt.s32.totalorder %s16, 1
        %s179 = scalar_select %p178, %s16, 1
        %s180 = smul.addr %s179, 8
        %s181 = scalar_lea.vmem %s0, %s180
        %p182 = scmp.lt.s32.totalorder %s16, 1
        %s183 = scalar_select %p182, %s16, 1
        %s184 = smul.addr %s183, 8
        %s185 = scalar_lea.vmem %s2, %s184
        %p187 = scmp.eq.s32.totalorder %s16, 0
        // Predicated region
        $region37: #{tpu_custom_call.1} parent=31 // pred_check
          %p188 = pneg %p187
        $region38: #{tpu_custom_call.1} parent=31 // pred_check_branch
          %190 = sbr.rel (%p188) target = $region40
        $region39: #{tpu_custom_call.1} parent=31 // pred_region
          %v191 = vld [vmem:[#allocation4] sm:$0xff]
          %v192 = vld [vmem:[#allocation4 + $0x8] sm:$0xff]
          %v193 = vld [vmem:[#allocation4 + $0x10] sm:$0xff]
          %v194 = vld [vmem:[#allocation4 + $0x18] sm:$0xff]
          %v195 = vld [vmem:[#allocation4 + $0x20] sm:$0xff]
          %v196 = vld [vmem:[#allocation4 + $0x28] sm:$0xff]
          %v197 = vld [vmem:[#allocation4 + $0x30] sm:$0xff]
          %v198 = vld [vmem:[#allocation4 + $0x38] sm:$0xff]
          %v199 = vld [vmem:[#allocation4 + $0x40] sm:$0xff]
          %v200 = vld [vmem:[#allocation4 + $0x48] sm:$0xff]
          %v201 = vld [vmem:[#allocation4 + $0x50] sm:$0xff]
          %v202 = vld [vmem:[#allocation4 + $0x58] sm:$0xff]
          %v203 = vld [vmem:[#allocation4 + $0x60] sm:$0xff]
          %v204 = vld [vmem:[#allocation4 + $0x68] sm:$0xff]
          %v205 = vld [vmem:[#allocation4 + $0x70] sm:$0xff]
          %v206 = vld [vmem:[#allocation4 + $0x78] sm:$0xff]
          %v207 = vmul.f32 %v191, %v191
          %v208 = vmul.f32 %v192, %v192
          %v209 = vmul.f32 %v193, %v193
          %v210 = vmul.f32 %v194, %v194
          %v211 = vmul.f32 %v195, %v195
          %v212 = vmul.f32 %v196, %v196
          %v213 = vmul.f32 %v197, %v197
          %v214 = vmul.f32 %v198, %v198
          %v215 = vmul.f32 %v199, %v199
          %v216 = vmul.f32 %v200, %v200
          %v217 = vmul.f32 %v201, %v201
          %v218 = vmul.f32 %v202, %v202
          %v219 = vmul.f32 %v203, %v203
          %v220 = vmul.f32 %v204, %v204
          %v221 = vmul.f32 %v205, %v205
          %v222 = vmul.f32 %v206, %v206
          %223 = vadd.xlane.f32.xlu0 %v207
          %v224 = vpop.xlane.xlu0 %223
          %225 = vadd.xlane.f32.xlu0 %v208
          %v226 = vpop.xlane.xlu0 %225
          %227 = vadd.xlane.f32.xlu0 %v209
          %v228 = vpop.xlane.xlu0 %227
          %229 = vadd.xlane.f32.xlu0 %v210
          %v230 = vpop.xlane.xlu0 %229
          %231 = vadd.xlane.f32.xlu0 %v211
          %v232 = vpop.xlane.xlu0 %231
          %233 = vadd.xlane.f32.xlu0 %v212
          %v234 = vpop.xlane.xlu0 %233
          %235 = vadd.xlane.f32.xlu0 %v213
          %v236 = vpop.xlane.xlu0 %235
          %237 = vadd.xlane.f32.xlu0 %v214
          %v238 = vpop.xlane.xlu0 %237
          %239 = vadd.xlane.f32.xlu0 %v215
          %v240 = vpop.xlane.xlu0 %239
          %241 = vadd.xlane.f32.xlu0 %v216
          %v242 = vpop.xlane.xlu0 %241
          %243 = vadd.xlane.f32.xlu0 %v217
          %v244 = vpop.xlane.xlu0 %243
          %245 = vadd.xlane.f32.xlu0 %v218
          %v246 = vpop.xlane.xlu0 %245
          %247 = vadd.xlane.f32.xlu0 %v219
          %v248 = vpop.xlane.xlu0 %247
          %249 = vadd.xlane.f32.xlu0 %v220
          %v250 = vpop.xlane.xlu0 %249
          %251 = vadd.xlane.f32.xlu0 %v221
          %v252 = vpop.xlane.xlu0 %251
          %253 = vadd.xlane.f32.xlu0 %v222
          %v254 = vpop.xlane.xlu0 %253
          %v255 = vmax.f32 %v224, 1e-24
          %v256 = vmax.f32 %v226, 1e-24
          %v257 = vmax.f32 %v228, 1e-24
          %v258 = vmax.f32 %v230, 1e-24
          %v259 = vmax.f32 %v232, 1e-24
          %v260 = vmax.f32 %v234, 1e-24
          %v261 = vmax.f32 %v236, 1e-24
          %v262 = vmax.f32 %v238, 1e-24
          %v263 = vmax.f32 %v240, 1e-24
          %v264 = vmax.f32 %v242, 1e-24
          %v265 = vmax.f32 %v244, 1e-24
          %v266 = vmax.f32 %v246, 1e-24
          %v267 = vmax.f32 %v248, 1e-24
          %v268 = vmax.f32 %v250, 1e-24
          %v269 = vmax.f32 %v252, 1e-24
          %v270 = vmax.f32 %v254, 1e-24
          %v271 = vrsqrt.pop %v255
          %v272 = vrsqrt.pop %v256
          %v273 = vrsqrt.pop %v257
          %v274 = vrsqrt.pop %v258
          %v275 = vrsqrt.pop %v259
          %v276 = vrsqrt.pop %v260
          %v277 = vrsqrt.pop %v261
          %v278 = vrsqrt.pop %v262
          %v279 = vrsqrt.pop %v263
          %v280 = vrsqrt.pop %v264
          %v281 = vrsqrt.pop %v265
          %v282 = vrsqrt.pop %v266
          %v283 = vrsqrt.pop %v267
          %v284 = vrsqrt.pop %v268
          %v285 = vrsqrt.pop %v269
          %v286 = vrsqrt.pop %v270
          %v287 = vmul.f32 %v271, 3.0
          %v288 = vmul.f32 %v272, 3.0
          %v289 = vmul.f32 %v273, 3.0
          %v290 = vmul.f32 %v274, 3.0
          %v291 = vmul.f32 %v275, 3.0
          %v292 = vmul.f32 %v276, 3.0
          %v293 = vmul.f32 %v277, 3.0
          %v294 = vmul.f32 %v278, 3.0
          %v295 = vmul.f32 %v279, 3.0
          %v296 = vmul.f32 %v280, 3.0
          %v297 = vmul.f32 %v281, 3.0
          %v298 = vmul.f32 %v282, 3.0
          %v299 = vmul.f32 %v283, 3.0
          %v300 = vmul.f32 %v284, 3.0
          %v301 = vmul.f32 %v285, 3.0
          %v302 = vmul.f32 %v286, 3.0
          %v303 = vmul.f32 %v191, %v287
          %v304 = vmul.f32 %v192, %v288
          %v305 = vmul.f32 %v193, %v289
          %v306 = vmul.f32 %v194, %v290
          %v307 = vmul.f32 %v195, %v291
          %v308 = vmul.f32 %v196, %v292
          %v309 = vmul.f32 %v197, %v293
          %v310 = vmul.f32 %v198, %v294
          %v311 = vmul.f32 %v199, %v295
          %v312 = vmul.f32 %v200, %v296
          %v313 = vmul.f32 %v201, %v297
          %v314 = vmul.f32 %v202, %v298
          %v315 = vmul.f32 %v203, %v299
          %v316 = vmul.f32 %v204, %v300
          %v317 = vmul.f32 %v205, %v301
          %v318 = vmul.f32 %v206, %v302
          %v319 = vpack.c.bf16 %v304, %v303
          %v320 = vpack.c.bf16 %v306, %v305
          %v321 = vpack.c.bf16 %v308, %v307
          %v322 = vpack.c.bf16 %v310, %v309
          %v323 = vpack.c.bf16 %v312, %v311
          %v324 = vpack.c.bf16 %v314, %v313
          %v325 = vpack.c.bf16 %v316, %v315
          %v326 = vpack.c.bf16 %v318, %v317
          %v335 = vunpack.c.l.b16 %v319
          %v336 = vunpack.c.h.b16 %v319
          %v337 = vunpack.c.l.b16 %v320
          %v338 = vunpack.c.h.b16 %v320
          %v339 = vunpack.c.l.b16 %v321
          %v340 = vunpack.c.h.b16 %v321
          %v341 = vunpack.c.l.b16 %v322
          %v342 = vunpack.c.h.b16 %v322
          %v343 = vunpack.c.l.b16 %v323
          %v344 = vunpack.c.h.b16 %v323
          %v345 = vunpack.c.l.b16 %v324
          %v346 = vunpack.c.h.b16 %v324
          %v347 = vunpack.c.l.b16 %v325
          %v348 = vunpack.c.h.b16 %v325
          %v349 = vunpack.c.l.b16 %v326
          %v350 = vunpack.c.h.b16 %v326
          %v351 = vpack.c.b16 %v335, %v335
          %v352 = vpack.c.b16 %v336, %v336
          %v353 = vpack.c.b16 %v337, %v337
          %v354 = vpack.c.b16 %v338, %v338
          %v355 = vpack.c.b16 %v339, %v339
          %v356 = vpack.c.b16 %v340, %v340
          %v357 = vpack.c.b16 %v341, %v341
          %v358 = vpack.c.b16 %v342, %v342
          %v359 = vpack.c.b16 %v343, %v343
          %v360 = vpack.c.b16 %v344, %v344
          %v361 = vpack.c.b16 %v345, %v345
          %v362 = vpack.c.b16 %v346, %v346
          %v363 = vpack.c.b16 %v347, %v347
          %v364 = vpack.c.b16 %v348, %v348
          %v365 = vpack.c.b16 %v349, %v349
          %v366 = vpack.c.b16 %v350, %v350
          %383 = vst [vmem:[#allocation2] sm:$0xf] %v351
          %384 = vst [vmem:[#allocation2 + $0x4] sm:$0xf] %v352
          %385 = vst [vmem:[#allocation2 + $0x8] sm:$0xf] %v353
          %386 = vst [vmem:[#allocation2 + $0xc] sm:$0xf] %v354
          %387 = vst [vmem:[#allocation2 + $0x10] sm:$0xf] %v355
          %388 = vst [vmem:[#allocation2 + $0x14] sm:$0xf] %v356
          %389 = vst [vmem:[#allocation2 + $0x18] sm:$0xf] %v357
          %390 = vst [vmem:[#allocation2 + $0x1c] sm:$0xf] %v358
          %391 = vst [vmem:[#allocation2 + $0x20] sm:$0xf] %v359
          %392 = vst [vmem:[#allocation2 + $0x24] sm:$0xf] %v360
          %393 = vst [vmem:[#allocation2 + $0x28] sm:$0xf] %v361
          %394 = vst [vmem:[#allocation2 + $0x2c] sm:$0xf] %v362
          %395 = vst [vmem:[#allocation2 + $0x30] sm:$0xf] %v363
          %396 = vst [vmem:[#allocation2 + $0x34] sm:$0xf] %v364
          %397 = vst [vmem:[#allocation2 + $0x38] sm:$0xf] %v365
          %398 = vst [vmem:[#allocation2 + $0x3c] sm:$0xf] %v366
          %vm399 = vcmask 0
          %400 = vst.msk [vmem:[#allocation3] sm:$0x1] %vm399, 0.0
        $region40: #{tpu_custom_call.1} parent=31 // pred_fallthru
          _
        %v401 = vld [vmem:[%s181] sm:$0xff]
        %v402 = vmul.f32 %v401, %v401
        %403 = vadd.xlane.f32.xlu0 %v402
        %v404 = vpop.xlane.xlu0 %403
        %v405 = vmax.f32 %v404, 1e-24
        %v406 = vrsqrt.pop %v405
        %v407 = vmul.f32 %v406, 6.0
        %v408 = vmul.f32 %v401, %v407
        %v409 = vpack.c.bf16 %v408, %v408
        %v410 = vld [vmem:[#allocation2] sm:$0xf]
        %v411 = vld [vmem:[#allocation2 + $0x4] sm:$0xf]
        %v412 = vld [vmem:[#allocation2 + $0x8] sm:$0xf]
        %v413 = vld [vmem:[#allocation2 + $0xc] sm:$0xf]
        %v414 = vld [vmem:[#allocation2 + $0x10] sm:$0xf]
        %v415 = vld [vmem:[#allocation2 + $0x14] sm:$0xf]
        %v416 = vld [vmem:[#allocation2 + $0x18] sm:$0xf]
        %v417 = vld [vmem:[#allocation2 + $0x1c] sm:$0xf]
        %v418 = vld [vmem:[#allocation2 + $0x20] sm:$0xf]
        %v419 = vld [vmem:[#allocation2 + $0x24] sm:$0xf]
        %v420 = vld [vmem:[#allocation2 + $0x28] sm:$0xf]
        %v421 = vld [vmem:[#allocation2 + $0x2c] sm:$0xf]
        %v422 = vld [vmem:[#allocation2 + $0x30] sm:$0xf]
        %v423 = vld [vmem:[#allocation2 + $0x34] sm:$0xf]
        %v424 = vld [vmem:[#allocation2 + $0x38] sm:$0xf]
        %v425 = vld [vmem:[#allocation2 + $0x3c] sm:$0xf]
        %v442 = vunpack.c.l.b16 %v410
        %v443 = vunpack.c.l.b16 %v411
        %v444 = vunpack.c.l.b16 %v412
        %v445 = vunpack.c.l.b16 %v413
        %v446 = vunpack.c.l.b16 %v414
        %v447 = vunpack.c.l.b16 %v415
        %v448 = vunpack.c.l.b16 %v416
        %v449 = vunpack.c.l.b16 %v417
        %v450 = vunpack.c.l.b16 %v418
        %v451 = vunpack.c.l.b16 %v419
        %v452 = vunpack.c.l.b16 %v420
        %v453 = vunpack.c.l.b16 %v421
        %v454 = vunpack.c.l.b16 %v422
        %v455 = vunpack.c.l.b16 %v423
        %v456 = vunpack.c.l.b16 %v424
        %v457 = vunpack.c.l.b16 %v425
        %v458 = vpack.c.b16 %v443, %v442
        %v459 = vpack.c.b16 %v445, %v444
        %v460 = vpack.c.b16 %v447, %v446
        %v461 = vpack.c.b16 %v449, %v448
        %v462 = vpack.c.b16 %v451, %v450
        %v463 = vpack.c.b16 %v453, %v452
        %v464 = vpack.c.b16 %v455, %v454
        %v465 = vpack.c.b16 %v457, %v456
        %474 = vmatprep.subr.bf16.mxu0 0
        %475 = vmatpush1.bf16.xpose.msra.mxu0 %v465
        %476 = vmatprep.subr.bf16.mxu0 0
        %477 = vmatpush1.bf16.xpose.msra.mxu0 %v464
        %478 = vmatprep.subr.bf16.mxu0 0
        %479 = vmatpush1.bf16.xpose.msra.mxu0 %v463
        %480 = vmatprep.subr.bf16.mxu0 0
        %481 = vmatpush1.bf16.xpose.msra.mxu0 %v462
        %482 = vmatprep.subr.bf16.mxu0 0
        %483 = vmatpush1.bf16.xpose.msra.mxu0 %v461
        %484 = vmatprep.subr.bf16.mxu0 0
        %485 = vmatpush1.bf16.xpose.msra.mxu0 %v460
        %486 = vmatprep.subr.bf16.mxu0 0
        %487 = vmatpush1.bf16.xpose.msra.mxu0 %v459
        %488 = vmatprep.subr.bf16.mxu0 0
        %489 = vmatpush1.bf16.xpose.msra.mxu0 %v458
        %490 = vmatprep.subr.bf16.mxu0 0
        %491 = vmatpush2.bf16.xpose.msra.mxu0 0
        %492 = vmatprep.subr.bf16.mxu0 0
        %493 = vmatpush2.bf16.xpose.msra.mxu0 0
        %494 = vmatprep.subr.bf16.mxu0 0
        %495 = vmatpush2.bf16.xpose.msra.mxu0 0
        %496 = vmatprep.subr.bf16.mxu0 0
        %497 = vmatpush2.bf16.xpose.msra.mxu0 0
        %498 = vmatprep.subr.bf16.mxu0 0
        %499 = vmatpush2.bf16.xpose.msra.mxu0 0
        %500 = vmatprep.subr.bf16.mxu0 0
        %501 = vmatpush2.bf16.xpose.msra.mxu0 0
        %502 = vmatprep.subr.bf16.mxu0 0
        %503 = vmatpush2.bf16.xpose.msra.mxu0 0
        %504 = vmatprep.subr.bf16.mxu0 0
        %505 = vmatpush2.bf16.xpose.msra.mxu0 0
        %506 = vmatprep.mubr.bf16.mxu0 0
        %507 = vmatmul.mubr.bf16.gmra.mxu0 %v409
        %v508 = vpop.f32.mrf.mxu0
        %v509 = vadd.f32 0.0, %v508
        %v510 = vpop.f32.mrf.mxu0
        %v511 = vpop.f32.mrf.mxu0
        %v512 = vpop.f32.mrf.mxu0
        %513 = vdwg.mxu0
        %v514 = vlaneseq
        %v515 = vand.u32 %v514, 127
        %vm516 = vcmp.lt.s32.totalorder %v515, 16
        %v517 = vsel %vm516, %v509, -1e+30
        %518 = vmax.xlane.f32.xlu0 %v517
        %v519 = vpop.xlane.xlu0 %518
        %v520 = vsub.f32 %v517, %v519
        %v521 = vmul.f32 %v520, 1.442695
        %v522 = vpow.pop %v521
        %523 = vadd.xlane.f32.xlu0 %v522
        %v524 = vpop.xlane.xlu0 %523
        %v525 = vlog2.pop %v524
        %v526 = vmul.f32 %v525, 0.6931472
        %v527 = vadd.f32 %v519, %v526
        %v528 = vld [vmem:[%s185] sm:$0xff]
        %529 = vset.pattern.permute.xlu0 0
        %530 = vperm.xlu0 %529, %v528
        %v531 = vpop.permute.xlu0 %530
        %vm532 = vcmp.eq.s32.totalorder %v515, %v531
        %v533 = vsel %vm532, %v517, 0.0
        %534 = vadd.xlane.f32.xlu0 %v533
        %v535 = vpop.xlane.xlu0 %534
        %v536 = vsub.f32 %v527, %v535
        %v537 = vld [vmem:[#allocation3] sm:$0x1]
        %vm538 = vcmask 7168
        %v539 = vsel %vm538, %v536, 0.0
        %540 = vadd.xlane.f32.xlu0 %v539
        %v541 = vpop.xlane.xlu0 %540
        %v542 = vrot.slane %v541, 4
        %v543 = vadd.f32 %v541, %v542
        %v544 = vrot.slane %v543, 2
        %v545 = vadd.f32 %v543, %v544
        %v546 = vrot.slane %v545, 1
        %v547 = vadd.f32 %v545, %v546
        %s548 = vtos %v547
        %v549 = vstv %s548
        %v550 = vadd.f32 %v537, %v549
        %vm551 = vcmask 0
        %552 = vst.msk [vmem:[#allocation3] sm:$0x1] %vm551, %v550
        %p553 = scmp.eq.s32.totalorder %s16, 1
        // Predicated region
        $region41: #{tpu_custom_call.1} parent=31 // pred_check
          %p554 = pneg %p553
        $region42: #{tpu_custom_call.1} parent=31 // pred_check_branch
          %556 = sbr.rel (%p554) target = $region44
        $region43: #{tpu_custom_call.1} parent=31 // pred_region
          %v557 = vld [vmem:[#allocation3] sm:$0x1]
          %v558 = vmul.f32 %v557, 0.0625
          %559 = vst.msk [vmem:[#allocation7] sm:$0x1] %vm551, %v558
        $region44: #{tpu_custom_call.1} parent=31 // pred_fallthru
          _
        // Predicated region
        $region45: #{tpu_custom_call.1} parent=31 // pred_check
          %p560 = pneg %p102
        $region46: #{tpu_custom_call.1} parent=31 // pred_check_branch
          %562 = sbr.rel (%p560) target = $region48
        $region47: #{tpu_custom_call.1} parent=31 // pred_region
          %s564 = ssub.s32 16, 16
          %565 = vsyncadd [#allocation6], %s564
          %s567 = sshll.u32 [#allocation7], 4
          %s568 = int_to_ptr.vmem [resolvable:$true] %s567
          %570 = dma.vmem_to_hbm [thread:$0]  %s568, 16, %s3, [#allocation6]
        $region48: #{tpu_custom_call.1} parent=31 // pred_fallthru
          _
        // Predicated region
        $region49: #{tpu_custom_call.1} parent=31 // pred_check
          %p571 = pneg %p102
        $region50: #{tpu_custom_call.1} parent=31 // pred_check_branch
          %573 = sbr.rel (%p571) target = $region52
        $region51: #{tpu_custom_call.1} parent=31 // pred_region
          %574 = dma.done [#allocation6], 16
        $region52: #{tpu_custom_call.1} parent=31 // pred_fallthru
          _
      $region32: #{tpu_custom_call.1} parent=5 // pred_fallthru
        _
      %p575 = scmp.le.s32.totalorder 2, %s11
      // Predicated region
      $region53: #{tpu_custom_call.1} parent=5 // pred_check
        %p576 = pneg %p575
      $region54: #{tpu_custom_call.1} parent=5 // pred_check_branch
        %578 = sbr.rel (%p576) target = $region56
      $region55: #{tpu_custom_call.1} parent=5 // pred_region
        %s579 = ssub.s32 %s11, 2
      $region56: #{tpu_custom_call.1} parent=5 // pred_fallthru
        _
    $region6: #{tpu_custom_call.1} parent=1 // loop_footer
      %s15 = sadd.s32 1, %s11
    $region7: #{tpu_custom_call.1} parent=1 // loop_footer_branch
      %10 = sbr.rel target = $region3
    $region8: #{tpu_custom_call.1} parent=1 // loop_exit
      _
    %580 = vsyncpa [#allocation5], 1
    %s581 = scalar_lea.sflag [#allocation5], 1
    %582 = vsyncpa %s581, 1
    %583 = vsyncpa [#allocation6], 1
    %s584 = scalar_lea.sflag [#allocation6], 1
    %585 = vsyncpa %s584, 1

</llo_original>
